<compile_context>
chip_gen: v7x
topology: tpu7x:2x2x1
jax: 0.10.0
libtpu: 0.0.40
codegen_flags: <defaults>
</compile_context>

<pallas_src>
import jax
import jax.numpy as jnp
from jax.experimental import pallas as pl
from jax.experimental.pallas import tpu as pltpu


# --------------------------------------------------------------------------
# Pallas kernel: Slepian projection -> block-diag MLP -> back-projection.
# All five ops are MXU matmuls with f32 accumulation.
# --------------------------------------------------------------------------
def _slep_kernel(h_ref, pin_ref, w1_ref, w2_ref, w3_ref, pout_ref, o_ref):
    f32 = jnp.float32
    bf16 = jnp.bfloat16

    x = h_ref[0]                                                  # (BB, N*F) bf16

    # Slepian projection:  (BB, N*F) @ (N*F, K*F) -> (BB, K*F)   [== 'bnf,nk->bkf']
    hs = jnp.dot(x, pin_ref[...], preferred_element_type=f32)

    # Layer 1: (BB, K*F) @ (K*F, K*Hd) -> (BB, K*Hd), ReLU        [== 'kic,bki->bkc']
    h1 = jnp.maximum(
        jnp.dot(hs.astype(bf16), w1_ref[...], preferred_element_type=f32), 0.0)

    # Layer 2: (BB, K*Hd) @ (K*Hd, K*Hd) -> (BB, K*Hd), ReLU      [== 'kch,bkc->bkh']
    h2 = jnp.maximum(
        jnp.dot(h1.astype(bf16), w2_ref[...], preferred_element_type=f32), 0.0)

    # Layer 3: (BB, K*Hd) @ (K*Hd, K*O) -> (BB, K*O)              [== 'kho,bkh->bko']
    hf = jnp.dot(h2.astype(bf16), w3_ref[...], preferred_element_type=f32)

    # Back-projection: (BB, K*O) @ (K*O, N*O) -> (BB, N*O)        [== 'nk,bko->bno']
    o_ref[0] = jnp.dot(hf.astype(bf16), pout_ref[...], preferred_element_type=f32)


def slep_filter_pallas(H, s_k, W1, W2, W3):
    """H: (B, N, F) f32, s_k: (N, K) f32 -> (B, N, O) f32."""
    B, N, F = H.shape
    K = s_k.shape[1]
    Hd = W1.shape[2]
    O = W3.shape[2]

    # Two batch blocks so both v7x TensorCores get work; harmless on v5e/v6e.
    G = 2 if B >= 2 else 1
    BB = pl.cdiv(B, G)
    Bp = G * BB
    if Bp != B:
        H = jnp.concatenate([H, jnp.zeros((Bp - B, N, F), H.dtype)], axis=0)

    bf16 = jnp.bfloat16
    eyeK = jnp.eye(K, dtype=jnp.float32)
    eyeF = jnp.eye(F, dtype=jnp.float32)
    eyeO = jnp.eye(O, dtype=jnp.float32)

    # Block-diagonal per-slepian weights: row/col layout is k-major.
    W1_bd = (W1[:, :, None, :] * eyeK[:, None, :, None]).reshape(K * F, K * Hd).astype(bf16)
    W2_bd = (W2[:, :, None, :] * eyeK[:, None, :, None]).reshape(K * Hd, K * Hd).astype(bf16)
    W3_bd = (W3[:, :, None, :] * eyeK[:, None, :, None]).reshape(K * Hd, K * O).astype(bf16)

    # Projection matrices (kron of s_k with small identities), so the Slepian
    # projection / back-projection are single matmuls with no in-kernel transpose.
    P_in = (s_k[:, None, :, None] * eyeF[None, :, None, :]).reshape(N * F, K * F).astype(bf16)
    P_out = (s_k.T[:, None, :, None] * eyeO[None, :, None, :]).reshape(K * O, N * O).astype(bf16)

    Hm = H.reshape(G, BB, N * F).astype(bf16)

    out = pl.pallas_call(
        _slep_kernel,
        out_shape=jax.ShapeDtypeStruct((G, BB, N * O), jnp.float32),
        grid_spec=pltpu.PrefetchScalarGridSpec(
            num_scalar_prefetch=0,
            grid=(G,),
            in_specs=[
                pl.BlockSpec((1, BB, N * F), lambda g: (g, 0, 0)),
                pl.BlockSpec((N * F, K * F), lambda g: (0, 0)),
                pl.BlockSpec((K * F, K * Hd), lambda g: (0, 0)),
                pl.BlockSpec((K * Hd, K * Hd), lambda g: (0, 0)),
                pl.BlockSpec((K * Hd, K * O), lambda g: (0, 0)),
                pl.BlockSpec((K * O, N * O), lambda g: (0, 0)),
            ],
            out_specs=pl.BlockSpec((1, BB, N * O), lambda g: (g, 0, 0)),
        ),
        compiler_params=pltpu.CompilerParams(
            dimension_semantics=("parallel",)),
    )(Hm, P_in, W1_bd, W2_bd, W3_bd, P_out)

    return out.reshape(Bp, N, O)[:B]


# --------------------------------------------------------------------------
# Module-equivalent setup (__init__) and forward
# --------------------------------------------------------------------------
def init_sleplayer(key, num_nodes, num_clusters, cluster_masks, num_slepians,
                   in_channels, hidden_dim, out_channels, adj):
    k1, k2, k3, k4 = jax.random.split(key, 4)
    params = {
        "W1": jax.random.normal(k1, (num_slepians, in_channels, hidden_dim), jnp.float32),
        "W2": jax.random.normal(k2, (num_slepians, hidden_dim, hidden_dim), jnp.float32),
        "W3": jax.random.normal(k3, (num_slepians, hidden_dim, out_channels), jnp.float32),
        "cluster_attention": jax.random.normal(k4, (num_clusters, 1), jnp.float32),
    }
    D = jnp.diag(jnp.sum(adj, axis=1))
    L = D - adj + 1e-05 * jnp.eye(num_nodes, dtype=jnp.float32)
    eigvals, U = jnp.linalg.eigh(L)  # TODO(synk): eigh has no Pallas equivalent; done in plain JAX
    buffers = {
        "cluster_masks": cluster_masks.astype(jnp.float32),
        "adj": adj,
        "U": U.astype(jnp.float32),
        "Lambda": jnp.diag(eigvals).astype(jnp.float32),
        "W": jnp.eye(num_nodes, dtype=jnp.float32)[:, :num_slepians],
        "num_nodes": num_nodes,
        "num_slepians": num_slepians,
        "in_channels": in_channels,
        "out_channels": out_channels,
    }
    return params, buffers


def _compute_s_k(params, buffers):
    """Glue math producing the Slepian basis s_k (N, K) — plain JAX (tiny)."""
    weights = jax.nn.sigmoid(params["cluster_attention"])              # (C, 1)
    combined_mask = jnp.squeeze(weights.T @ buffers["cluster_masks"])  # (N,)
    binary_mask = (combined_mask > 0.5).astype(jnp.float32)
    S = jnp.diag(binary_mask)                                          # (N, N)
    W = buffers["W"]                                                   # (N, K)
    Lambda_W = W.T @ buffers["Lambda"] @ W                             # (K, K)
    Lambda_W_sqrt = jnp.sqrt(Lambda_W)                                 # elementwise, as in torch .sqrt()
    temp = buffers["U"] @ W                                            # (N, K)
    C = Lambda_W_sqrt @ (temp.T @ S @ temp) @ Lambda_W_sqrt            # (K, K)
    # TODO(synk): eigh has no Pallas equivalent; K x K problem stays in plain JAX
    _, s = jnp.linalg.eigh(C)
    s_k = s[:, :buffers["num_slepians"]]                               # (K, K)
    s_k = buffers["U"] @ W @ s_k                                       # (N, K)
    return s_k


def sleplayer_forward(params, buffers, H_flat, edge_index, batch):
    # batch_size derived statically from shapes (no device->host sync).
    N = buffers["num_nodes"]
    F = buffers["in_channels"]
    O = buffers["out_channels"]
    batch_size = H_flat.shape[0] // N
    H = H_flat.reshape(batch_size, N, F)

    s_k = _compute_s_k(params, buffers)                                # (N, K)
    H_out = slep_filter_pallas(H, s_k,
                               params["W1"], params["W2"], params["W3"])
    return H_out.reshape(-1, O)


# --------------------------------------------------------------------------
# Pure-JAX reference for the filtering hot path (validation)
# --------------------------------------------------------------------------
def sleplayer_forward_ref(params, buffers, H_flat, edge_index, batch):
    N = buffers["num_nodes"]
    F = buffers["in_channels"]
    O = buffers["out_channels"]
    batch_size = H_flat.shape[0] // N
    H = H_flat.reshape(batch_size, N, F)
    s_k = _compute_s_k(params, buffers)
    H_slep = jnp.einsum('bnf,nk->bkf', H, s_k)
    H1 = jax.nn.relu(jnp.einsum('kic,bki->bkc', params["W1"], H_slep))
    H2 = jax.nn.relu(jnp.einsum('kch,bkc->bkh', params["W2"], H1))
    H_filtered = jnp.einsum('kho,bkh->bko', params["W3"], H2)
    H_out = jnp.einsum('nk,bko->bno', s_k, H_filtered)
    return H_out.reshape(-1, O)


# --------------------------------------------------------------------------
if __name__ == "__main__":
    # small, module-consistent shapes
    num_nodes = 16
    num_clusters = 4
    num_slepians = 8
    in_channels = 4
    hidden_dim = 32
    out_channels = 4
    batch_size = 2

    key = jax.random.PRNGKey(0)
    k_param, k_adj, k_h = jax.random.split(key, 3)

    # deterministic symmetric adjacency (no self-loops)
    a = jax.random.uniform(k_adj, (num_nodes, num_nodes), jnp.float32)
    a = (a + a.T) / 2.0
    adj = (a > 0.5).astype(jnp.float32) * (1.0 - jnp.eye(num_nodes, dtype=jnp.float32))

    # deterministic cluster masks: contiguous blocks of nodes
    cluster_masks = jnp.zeros((num_clusters, num_nodes), jnp.float32)
    block = num_nodes // num_clusters
    for c in range(num_clusters):
        cluster_masks = cluster_masks.at[c, c * block:(c + 1) * block].set(1.0)

    params, buffers = init_sleplayer(
        k_param, num_nodes, num_clusters, cluster_masks, num_slepians,
        in_channels, hidden_dim, out_channels, adj)

    # inputs: H is (batch_size * num_nodes, in_channels); edge_index unused in forward
    H_flat = jax.random.normal(k_h, (batch_size * num_nodes, in_channels), jnp.float32)
    edge_index = jnp.zeros((2, 1), jnp.int32)
    batch = jnp.repeat(jnp.arange(batch_size, dtype=jnp.int32), num_nodes)

    out = sleplayer_forward(params, buffers, H_flat, edge_index, batch)
    out = jax.block_until_ready(out)

    ref = jax.block_until_ready(
        sleplayer_forward_ref(params, buffers, H_flat, edge_index, batch))

    assert out.shape == (batch_size * num_nodes, out_channels), out.shape
    scale = jnp.max(jnp.abs(ref)) + 1e-6
    max_rel_err = jnp.max(jnp.abs(out - ref)) / scale
    # 2e-2 tolerance accounts for bf16 operands (f32 accumulation) in the kernel.
    assert float(max_rel_err) < 2e-2, f"mismatch: max_rel_err={float(max_rel_err)}"

    print("KERNEL_OK")
</pallas_src>

<mosaic_0001>
module attributes {stable_mosaic.version = 11 : i64} {
  func.func @_slep_kernel(%arg0: i32, %arg1: memref<1x1x64xbf16, #tpu.memory_space<vmem>>, %arg2: memref<64x32xbf16, #tpu.memory_space<vmem>>, %arg3: memref<32x256xbf16, #tpu.memory_space<vmem>>, %arg4: memref<256x256xbf16, #tpu.memory_space<vmem>>, %arg5: memref<256x32xbf16, #tpu.memory_space<vmem>>, %arg6: memref<32x64xbf16, #tpu.memory_space<vmem>>, %arg7: memref<1x1x64xf32, #tpu.memory_space<vmem>>) attributes {dimension_semantics = [#tpu.dimension_semantics<parallel>], iteration_bounds = array<i64: 2>, scalar_prefetch = 0 : i64, scratch_operands = 0 : i64, tpu.core_type = #tpu.core_type<tc>, window_params = [{transform_indices = @transform_0, window_bounds = array<i64: 1, 1, 64>}, {pipeline_mode = #tpu.pipeline_mode<synchronous>, transform_indices = @transform_1, window_bounds = array<i64: 64, 32>}, {pipeline_mode = #tpu.pipeline_mode<synchronous>, transform_indices = @transform_2, window_bounds = array<i64: 32, 256>}, {pipeline_mode = #tpu.pipeline_mode<synchronous>, transform_indices = @transform_3, window_bounds = array<i64: 256, 256>}, {pipeline_mode = #tpu.pipeline_mode<synchronous>, transform_indices = @transform_4, window_bounds = array<i64: 256, 32>}, {pipeline_mode = #tpu.pipeline_mode<synchronous>, transform_indices = @transform_5, window_bounds = array<i64: 32, 64>}, {transform_indices = @transform_6, window_bounds = array<i64: 1, 1, 64>}]} {
    %c0 = arith.constant 0 : index
    %c0_0 = arith.constant 0 : index
    %c0_1 = arith.constant 0 : index
    %0 = vector.load %arg1[%c0, %c0_0, %c0_1] : memref<1x1x64xbf16, #tpu.memory_space<vmem>>, vector<1x1x64xbf16>
    %1 = vector.shape_cast %0 : vector<1x1x64xbf16> to vector<1x64xbf16>
    %c0_2 = arith.constant 0 : index
    %c0_3 = arith.constant 0 : index
    %2 = vector.load %arg2[%c0_2, %c0_3] : memref<64x32xbf16, #tpu.memory_space<vmem>>, vector<64x32xbf16>
    %cst = arith.constant dense<0.000000e+00> : vector<1x32xf32>
    %3 = tpu.matmul %1, %2, %cst {dimension_numbers = #tpu.dot_dimension_numbers<[1], [0], [0], [1], [0, 0, 1, 1], [], []>} : vector<1x64xbf16>, vector<64x32xbf16>, vector<1x32xf32> -> vector<1x32xf32>
    %4 = arith.truncf %3 : vector<1x32xf32> to vector<1x32xbf16>
    %c0_4 = arith.constant 0 : index
    %c0_5 = arith.constant 0 : index
    %5 = vector.load %arg3[%c0_4, %c0_5] : memref<32x256xbf16, #tpu.memory_space<vmem>>, vector<32x256xbf16>
    %cst_6 = arith.constant dense<0.000000e+00> : vector<1x256xf32>
    %6 = tpu.matmul %4, %5, %cst_6 {dimension_numbers = #tpu.dot_dimension_numbers<[1], [0], [0], [1], [0, 0, 1, 1], [], []>} : vector<1x32xbf16>, vector<32x256xbf16>, vector<1x256xf32> -> vector<1x256xf32>
    %cst_7 = arith.constant 0.000000e+00 : f32
    %7 = vector.broadcast %cst_7 : f32 to vector<1x256xf32>
    %8 = arith.maximumf %6, %7 : vector<1x256xf32>
    %9 = arith.truncf %8 : vector<1x256xf32> to vector<1x256xbf16>
    %c0_8 = arith.constant 0 : index
    %c0_9 = arith.constant 0 : index
    %10 = vector.load %arg4[%c0_8, %c0_9] : memref<256x256xbf16, #tpu.memory_space<vmem>>, vector<256x256xbf16>
    %cst_10 = arith.constant dense<0.000000e+00> : vector<1x256xf32>
    %11 = tpu.matmul %9, %10, %cst_10 {dimension_numbers = #tpu.dot_dimension_numbers<[1], [0], [0], [1], [0, 0, 1, 1], [], []>} : vector<1x256xbf16>, vector<256x256xbf16>, vector<1x256xf32> -> vector<1x256xf32>
    %cst_11 = arith.constant 0.000000e+00 : f32
    %12 = vector.broadcast %cst_11 : f32 to vector<1x256xf32>
    %13 = arith.maximumf %11, %12 : vector<1x256xf32>
    %14 = arith.truncf %13 : vector<1x256xf32> to vector<1x256xbf16>
    %c0_12 = arith.constant 0 : index
    %c0_13 = arith.constant 0 : index
    %15 = vector.load %arg5[%c0_12, %c0_13] : memref<256x32xbf16, #tpu.memory_space<vmem>>, vector<256x32xbf16>
    %cst_14 = arith.constant dense<0.000000e+00> : vector<1x32xf32>
    %16 = tpu.matmul %14, %15, %cst_14 {dimension_numbers = #tpu.dot_dimension_numbers<[1], [0], [0], [1], [0, 0, 1, 1], [], []>} : vector<1x256xbf16>, vector<256x32xbf16>, vector<1x32xf32> -> vector<1x32xf32>
    %17 = arith.truncf %16 : vector<1x32xf32> to vector<1x32xbf16>
    %c0_15 = arith.constant 0 : index
    %c0_16 = arith.constant 0 : index
    %18 = vector.load %arg6[%c0_15, %c0_16] : memref<32x64xbf16, #tpu.memory_space<vmem>>, vector<32x64xbf16>
    %cst_17 = arith.constant dense<0.000000e+00> : vector<1x64xf32>
    %19 = tpu.matmul %17, %18, %cst_17 {dimension_numbers = #tpu.dot_dimension_numbers<[1], [0], [0], [1], [0, 0, 1, 1], [], []>} : vector<1x32xbf16>, vector<32x64xbf16>, vector<1x64xf32> -> vector<1x64xf32>
    %c0_18 = arith.constant 0 : index
    %c0_19 = arith.constant 0 : index
    %c0_20 = arith.constant 0 : index
    %20 = vector.load %arg7[%c0_18, %c0_19, %c0_20] : memref<1x1x64xf32, #tpu.memory_space<vmem>>, vector<1x1x64xf32>
    %21 = vector.shape_cast %20 : vector<1x1x64xf32> to vector<1x64xf32>
    %22 = vector.shape_cast %19 : vector<1x64xf32> to vector<1x1x64xf32>
    tpu.vector_store %arg7[%c0_18, %c0_19, %c0_20], %22 {strides = array<i32>} : memref<1x1x64xf32, #tpu.memory_space<vmem>>, vector<1x1x64xf32>,
    return
  }
  func.func @transform_0(%arg0: i32) -> (i32, i32, i32) {
    %c0_i32 = arith.constant 0 : i32
    %c0_i32_0 = arith.constant 0 : i32
    %c0_i32_1 = arith.constant 0 : i32
    return %arg0, %c0_i32, %c0_i32_0 : i32, i32, i32
  }
  func.func @transform_1(%arg0: i32) -> (i32, i32) {
    %c0_i32 = arith.constant 0 : i32
    %c0_i32_0 = arith.constant 0 : i32
    %c0_i32_1 = arith.constant 0 : i32
    return %c0_i32, %c0_i32_0 : i32, i32
  }
  func.func @transform_2(%arg0: i32) -> (i32, i32) {
    %c0_i32 = arith.constant 0 : i32
    %c0_i32_0 = arith.constant 0 : i32
    %c0_i32_1 = arith.constant 0 : i32
    return %c0_i32, %c0_i32_0 : i32, i32
  }
  func.func @transform_3(%arg0: i32) -> (i32, i32) {
    %c0_i32 = arith.constant 0 : i32
    %c0_i32_0 = arith.constant 0 : i32
    %c0_i32_1 = arith.constant 0 : i32
    return %c0_i32, %c0_i32_0 : i32, i32
  }
  func.func @transform_4(%arg0: i32) -> (i32, i32) {
    %c0_i32 = arith.constant 0 : i32
    %c0_i32_0 = arith.constant 0 : i32
    %c0_i32_1 = arith.constant 0 : i32
    return %c0_i32, %c0_i32_0 : i32, i32
  }
  func.func @transform_5(%arg0: i32) -> (i32, i32) {
    %c0_i32 = arith.constant 0 : i32
    %c0_i32_0 = arith.constant 0 : i32
    %c0_i32_1 = arith.constant 0 : i32
    return %c0_i32, %c0_i32_0 : i32, i32
  }
  func.func @transform_6(%arg0: i32) -> (i32, i32, i32) {
    %c0_i32 = arith.constant 0 : i32
    %c0_i32_0 = arith.constant 0 : i32
    %c0_i32_1 = arith.constant 0 : i32
    return %arg0, %c0_i32, %c0_i32_0 : i32, i32, i32
  }
}

</mosaic_0001>

<llo_original>
// kernel: tpu_custom_call.1
$region0: #{tpu_custom_call.1}
  #allocation0 [shape = 'u32[]', space=smem, size = 0x4, offset = 0x4, fixed_abs, tag = 'smem constant byte address 0x4 - core index']
  #allocation1 [shape = 'u32[144,128]{1,0:T(1,128)}', space=vmem, size = 0x12000, scoped, tag = 'internal scratch']
  %s0 = inlined_call_operand.vmem [shape: bf16[2,1,64], index: 0, kind: input, shape index: {}]
  %s1 = inlined_call_operand.vmem [shape: bf16[64,32], index: 1, kind: input, shape index: {}]
  %s2 = inlined_call_operand.vmem [shape: bf16[32,256], index: 2, kind: input, shape index: {}]
  %s3 = inlined_call_operand.hbm [shape: bf16[256,256], index: 3, kind: input, shape index: {}]
  %s4 = inlined_call_operand.vmem [shape: bf16[256,32], index: 4, kind: input, shape index: {}]
  %s5 = inlined_call_operand.vmem [shape: bf16[32,64], index: 5, kind: input, shape index: {}]
  %s6 = inlined_call_operand.hbm [shape: f32[2,1,64], index: 6, kind: output, shape index: {}]
  %s7 = sld [smem:[#allocation0]]
  $region61: #{tpu_custom_call.1} parent=0
    _
  %s9 = ssub.s32 1, %s7
  %s10 = scalar_select 0, %s9, %s7
  $region1: #{tpu_custom_call.1} parent=0
    #allocation2 [shape = 'u8[131072]{0}', space=vmem, size = 0x20000, scoped, tag = 'input window, operand 3, single buffered']
    #allocation3 [shape = 's32[2]{0}', space=sflag, size = 0x8, scoped, tag = 'scoped memory for tpu_custom_call.1']
    #allocation4 [shape = 's32[2]{0}', space=sflag, size = 0x8, scoped, tag = 'scoped memory for tpu_custom_call.1']
    #allocation5 [shape = 'u8[1024]{0}', space=vmem, size = 0x400, scoped, tag = 'output window, operand 0']
    %11 = vsyncpa [#allocation3], 0
    %12 = vsyncpa [#allocation4], 0
    %s13 = scalar_lea.sflag [#allocation4], 1
    %14 = vsyncpa %s13, 0
    loop: start=0, step=1, limit=4
    $region2: #{tpu_custom_call.1} parent=1 // loop_pre_header
      _
    $region3: #{tpu_custom_call.1} parent=1 // loop_header
      %s16 = sphi 0, %s20
      %p17 = scmp.ge.s32.totalorder %s16, 4
      %s26 = sphi 0, %s28
      %s29 = sphi 0, %s26
      %s30 = sphi 0, %s29
      %s46 = sphi 0, %s30
      %s50 = sphi 0, %s50
      %s52 = sphi 0, %s50
      %s53 = sphi 0, %s52
      %s67 = sphi 0, %s53
      %s71 = sphi 0, %s71
      %s73 = sphi 0, %s71
      %s74 = sphi 0, %s73
      %s88 = sphi 0, %s74
      %s92 = sphi 0, %s92
      %s94 = sphi 0, %s92
      %s95 = sphi 0, %s94
      %s109 = sphi 0, %s95
      %s113 = sphi 0, %s113
      %s115 = sphi 0, %s113
      %s116 = sphi 0, %s115
      %s130 = sphi 0, %s116
      %s134 = sphi 0, %s134
      %s136 = sphi 0, %s134
      %s137 = sphi 0, %s136
      %s151 = sphi 0, %s137
      %s157 = sphi 0, %s159
      %s160 = sphi 0, %s157
      %s161 = sphi 0, %s160
      %s177 = sphi 0, %s161
    $region4: #{tpu_custom_call.1} parent=1 // loop_header_branch
      %19 = sbr.rel (%p17) target = $region8
    $region5: #{tpu_custom_call.1} parent=1 // loop_body
      %s21 = ssub.s32 %s16, 1
      %s22 = ssub.s32 %s16, 2
      %s23 = sadd.s32 %s16, 1
      %s24 = ssub.s32 %s16, %s23
      %p25 = scmp.eq.s32.totalorder %s24, 0
      %s27 = sadd.s32 %s26, 1
      %s28 = scalar_select %p25, %s26, %s27
      %p31 = pneg %p25
      %p32 = scmp.eq.s32.totalorder %s16, 1
      %p33 = por %p31, %p32
      %p34 = scmp.ne.s32.totalorder %s26, %s29
      %p35 = scmp.eq.s32.totalorder %s16, 0
      %p36 = por %p34, %p35
      %p37 = scmp.ne.s32.totalorder %s26, %s29
      %p38 = scmp.eq.s32.totalorder %s21, 1
      %p39 = por %p37, %p38
      %p40 = scmp.ne.s32.totalorder %s29, %s30
      %p41 = scmp.eq.s32.totalorder %s21, 0
      %p42 = por %p40, %p41
      %p43 = scmp.ne.s32.totalorder %s29, %s30
      %p44 = scmp.eq.s32.totalorder %s22, 1
      %p45 = por %p43, %p44
      %p47 = scmp.ne.s32.totalorder %s30, %s46
      %p48 = scmp.eq.s32.totalorder %s22, 0
      %p49 = por %p47, %p48
      %s51 = sadd.s32 %s50, 1
      %p54 = scmp.eq.s32.totalorder %s16, 1
      %p55 = scmp.ne.s32.totalorder %s50, %s52
      %p56 = scmp.eq.s32.totalorder %s16, 0
      %p57 = por %p55, %p56
      %p58 = scmp.ne.s32.totalorder %s50, %s52
      %p59 = scmp.eq.s32.totalorder %s21, 1
      %p60 = por %p58, %p59
      %p61 = scmp.ne.s32.totalorder %s52, %s53
      %p62 = scmp.eq.s32.totalorder %s21, 0
      %p63 = por %p61, %p62
      %p64 = scmp.ne.s32.totalorder %s52, %s53
      %p65 = scmp.eq.s32.totalorder %s22, 1
      %p66 = por %p64, %p65
      %p68 = scmp.ne.s32.totalorder %s53, %s67
      %p69 = scmp.eq.s32.totalorder %s22, 0
      %p70 = por %p68, %p69
      %s72 = sadd.s32 %s71, 1
      %p75 = scmp.eq.s32.totalorder %s16, 1
      %p76 = scmp.ne.s32.totalorder %s71, %s73
      %p77 = scmp.eq.s32.totalorder %s16, 0
      %p78 = por %p76, %p77
      %p79 = scmp.ne.s32.totalorder %s71, %s73
      %p80 = scmp.eq.s32.totalorder %s21, 1
      %p81 = por %p79, %p80
      %p82 = scmp.ne.s32.totalorder %s73, %s74
      %p83 = scmp.eq.s32.totalorder %s21, 0
      %p84 = por %p82, %p83
      %p85 = scmp.ne.s32.totalorder %s73, %s74
      %p86 = scmp.eq.s32.totalorder %s22, 1
      %p87 = por %p85, %p86
      %p89 = scmp.ne.s32.totalorder %s74, %s88
      %p90 = scmp.eq.s32.totalorder %s22, 0
      %p91 = por %p89, %p90
      %s93 = sadd.s32 %s92, 1
      %p96 = scmp.eq.s32.totalorder %s16, 1
      %p97 = scmp.ne.s32.totalorder %s92, %s94
      %p98 = scmp.eq.s32.totalorder %s16, 0
      %p99 = por %p97, %p98
      %p100 = scmp.ne.s32.totalorder %s92, %s94
      %p101 = scmp.eq.s32.totalorder %s21, 1
      %p102 = por %p100, %p101
      %p103 = scmp.ne.s32.totalorder %s94, %s95
      %p104 = scmp.eq.s32.totalorder %s21, 0
      %p105 = por %p103, %p104
      %p106 = scmp.ne.s32.totalorder %s94, %s95
      %p107 = scmp.eq.s32.totalorder %s22, 1
      %p108 = por %p106, %p107
      %p110 = scmp.ne.s32.totalorder %s95, %s109
      %p111 = scmp.eq.s32.totalorder %s22, 0
      %p112 = por %p110, %p111
      %s114 = sadd.s32 %s113, 1
      %p117 = scmp.eq.s32.totalorder %s16, 1
      %p118 = scmp.ne.s32.totalorder %s113, %s115
      %p119 = scmp.eq.s32.totalorder %s16, 0
      %p120 = por %p118, %p119
      %p121 = scmp.ne.s32.totalorder %s113, %s115
      %p122 = scmp.eq.s32.totalorder %s21, 1
      %p123 = por %p121, %p122
      %p124 = scmp.ne.s32.totalorder %s115, %s116
      %p125 = scmp.eq.s32.totalorder %s21, 0
      %p126 = por %p124, %p125
      %p127 = scmp.ne.s32.totalorder %s115, %s116
      %p128 = scmp.eq.s32.totalorder %s22, 1
      %p129 = por %p127, %p128
      %p131 = scmp.ne.s32.totalorder %s116, %s130
      %p132 = scmp.eq.s32.totalorder %s22, 0
      %p133 = por %p131, %p132
      %s135 = sadd.s32 %s134, 1
      %p138 = scmp.eq.s32.totalorder %s16, 1
      %p139 = scmp.ne.s32.totalorder %s134, %s136
      %p140 = scmp.eq.s32.totalorder %s16, 0
      %p141 = por %p139, %p140
      %p142 = scmp.ne.s32.totalorder %s134, %s136
      %p143 = scmp.eq.s32.totalorder %s21, 1
      %p144 = por %p142, %p143
      %p145 = scmp.ne.s32.totalorder %s136, %s137
      %p146 = scmp.eq.s32.totalorder %s21, 0
      %p147 = por %p145, %p146
      %p148 = scmp.ne.s32.totalorder %s136, %s137
      %p149 = scmp.eq.s32.totalorder %s22, 1
      %p150 = por %p148, %p149
      %p152 = scmp.ne.s32.totalorder %s137, %s151
      %p153 = scmp.eq.s32.totalorder %s22, 0
      %p154 = por %p152, %p153
      %s155 = ssub.s32 %s16, %s23
      %p156 = scmp.eq.s32.totalorder %s155, 0
      %s158 = sadd.s32 %s157, 1
      %s159 = scalar_select %p156, %s157, %s158
      %p162 = pneg %p156
      %p163 = scmp.eq.s32.totalorder %s16, 1
      %p164 = por %p162, %p163
      %p165 = scmp.ne.s32.totalorder %s157, %s160
      %p166 = scmp.eq.s32.totalorder %s16, 0
      %p167 = por %p165, %p166
      %p168 = scmp.ne.s32.totalorder %s157, %s160
      %p169 = scmp.eq.s32.totalorder %s21, 1
      %p170 = por %p168, %p169
      %p171 = scmp.ne.s32.totalorder %s160, %s161
      %p172 = scmp.eq.s32.totalorder %s21, 0
      %p173 = por %p171, %p172
      %p174 = scmp.ne.s32.totalorder %s160, %s161
      %p175 = scmp.eq.s32.totalorder %s22, 1
      %p176 = por %p174, %p175
      %p178 = scmp.ne.s32.totalorder %s161, %s177
      %p179 = scmp.eq.s32.totalorder %s22, 0
      %p180 = por %p178, %p179
      %p181 = scmp.le.s32.totalorder 1, %s16
      %p182 = scmp.lt.s32.totalorder %s16, 3
      %p183 = pnand %p181, %p182
      %p184 = pneg %p183
      // Predicated region
      $region9: #{tpu_custom_call.1} parent=5 // pred_check
        _
      $region10: #{tpu_custom_call.1} parent=5 // pred_check_branch
        %186 = sbr.rel (%p183) target = $region12
      $region11: #{tpu_custom_call.1} parent=5 // pred_region
        %s187 = ssub.s32 %s16, 1
        // Predicated region
        $region13: #{tpu_custom_call.1} parent=11 // pred_check
          %p188 = pneg %p63
        $region14: #{tpu_custom_call.1} parent=11 // pred_check_branch
          %190 = sbr.rel (%p188) target = $region16
        $region15: #{tpu_custom_call.1} parent=11 // pred_region
          _
        $region16: #{tpu_custom_call.1} parent=11 // pred_fallthru
          _
        // Predicated region
        $region17: #{tpu_custom_call.1} parent=11 // pred_check
          %p191 = pneg %p84
        $region18: #{tpu_custom_call.1} parent=11 // pred_check_branch
          %193 = sbr.rel (%p191) target = $region20
        $region19: #{tpu_custom_call.1} parent=11 // pred_region
          _
        $region20: #{tpu_custom_call.1} parent=11 // pred_fallthru
          _
        // Predicated region
        $region21: #{tpu_custom_call.1} parent=11 // pred_check
          %p194 = pneg %p105
        $region22: #{tpu_custom_call.1} parent=11 // pred_check_branch
          %196 = sbr.rel (%p194) target = $region24
        $region23: #{tpu_custom_call.1} parent=11 // pred_region
          %s198 = ssub.s32 4096, 4096
          %199 = vsyncadd [#allocation3], %s198
          %s200 = sshll.u32 [#allocation2], 4
          %s201 = int_to_ptr.vmem [resolvable:$true] %s200
          %206 = dma.hbm_to_vmem [thread:$0]  %s3, 4096, %s201, [#allocation3], 128, 128, 8
        $region24: #{tpu_custom_call.1} parent=11 // pred_fallthru
          _
        // Predicated region
        $region25: #{tpu_custom_call.1} parent=11 // pred_check
          %p207 = pneg %p126
        $region26: #{tpu_custom_call.1} parent=11 // pred_check_branch
          %209 = sbr.rel (%p207) target = $region28
        $region27: #{tpu_custom_call.1} parent=11 // pred_region
          _
        $region28: #{tpu_custom_call.1} parent=11 // pred_fallthru
          _
        // Predicated region
        $region29: #{tpu_custom_call.1} parent=11 // pred_check
          %p210 = pneg %p147
        $region30: #{tpu_custom_call.1} parent=11 // pred_check_branch
          %212 = sbr.rel (%p210) target = $region32
        $region31: #{tpu_custom_call.1} parent=11 // pred_region
          _
        $region32: #{tpu_custom_call.1} parent=11 // pred_fallthru
          _
      $region12: #{tpu_custom_call.1} parent=5 // pred_fallthru
        _
      %p213 = scmp.lt.s32.totalorder %s16, 2
      // Predicated region
      $region33: #{tpu_custom_call.1} parent=5 // pred_check
        %p214 = pneg %p213
      $region34: #{tpu_custom_call.1} parent=5 // pred_check_branch
        %216 = sbr.rel (%p214) target = $region36
      $region35: #{tpu_custom_call.1} parent=5 // pred_region
        // Predicated region
        $region37: #{tpu_custom_call.1} parent=35 // pred_check
          %p217 = pneg %p36
        $region38: #{tpu_custom_call.1} parent=35 // pred_check_branch
          %219 = sbr.rel (%p217) target = $region40
        $region39: #{tpu_custom_call.1} parent=35 // pred_region
          %p220 = scmp.lt.s32.totalorder %s16, 1
          %s221 = scalar_select %p220, %s16, 1
          %s222 = scalar_lea.vmem %s0, %s221
        $region40: #{tpu_custom_call.1} parent=35 // pred_fallthru
          _
      $region36: #{tpu_custom_call.1} parent=5 // pred_fallthru
        _
      %p223 = scmp.le.s32.totalorder 1, %s16
      %p224 = scmp.lt.s32.totalorder %s16, 3
      %p225 = pnand %p223, %p224
      %p226 = pneg %p225
      // Predicated region
      $region41: #{tpu_custom_call.1} parent=5 // pred_check
        _
      $region42: #{tpu_custom_call.1} parent=5 // pred_check_branch
        %228 = sbr.rel (%p225) target = $region44
      $region43: #{tpu_custom_call.1} parent=5 // pred_region
        %s229 = ssub.s32 %s16, 1
        // Predicated region
        $region45: #{tpu_custom_call.1} parent=43 // pred_check
          %p230 = pneg %p105
        $region46: #{tpu_custom_call.1} parent=43 // pred_check_branch
          %232 = sbr.rel (%p230) target = $region48
        $region47: #{tpu_custom_call.1} parent=43 // pred_region
          %233 = dma.done [#allocation3], 4096
        $region48: #{tpu_custom_call.1} parent=43 // pred_fallthru
          _
        %p234 = scmp.lt.s32.totalorder %s21, 1
        %s235 = scalar_select %p234, %s21, 1
        %s236 = scalar_lea.vmem %s0, %s235
        %p237 = pneg %p42
        %p238 = pneg %p39
        %p239 = pneg %p63
        %p240 = pneg %p60
        %p241 = pneg %p84
        %p242 = pneg %p81
        %p243 = pneg %p105
        %p244 = pneg %p102
        %p245 = pneg %p126
        %p246 = pneg %p123
        %p247 = pneg %p147
        %p248 = pneg %p144
        %p249 = pneg %p173
        %p250 = pneg %p170
        %s251 = sand.u32 %s160, 1
        %s252 = scalar_lea.sflag [#allocation4], %s251
        %s253 = sand.u32 %s160, 1
        %s254 = scalar_lea.vmem [#allocation5], %s253
        %p255 = scmp.lt.s32.totalorder %s21, 1
        %s256 = scalar_select %p255, %s21, 1
        %s257 = scalar_lea.vmem %s0, %s256
        %v259 = vld [vmem:[%s257] sm:$0x1]
        %v260 = vld [vmem:[%s1] sm:$0xf]
        %v261 = vld [vmem:[%s1 + $0x4] sm:$0xf]
        %v262 = vld [vmem:[%s1 + $0x8] sm:$0xf]
        %v263 = vld [vmem:[%s1 + $0xc] sm:$0xf]
        %v264 = vld [vmem:[%s1 + $0x10] sm:$0xf]
        %v265 = vld [vmem:[%s1 + $0x14] sm:$0xf]
        %v266 = vld [vmem:[%s1 + $0x18] sm:$0xf]
        %v267 = vld [vmem:[%s1 + $0x1c] sm:$0xf]
        %v276 = vunpack.c.l.b16 %v260
        %v277 = vunpack.c.l.b16 %v261
        %v278 = vunpack.c.l.b16 %v262
        %v279 = vunpack.c.l.b16 %v263
        %v280 = vunpack.c.l.b16 %v264
        %v281 = vunpack.c.l.b16 %v265
        %v282 = vunpack.c.l.b16 %v266
        %v283 = vunpack.c.l.b16 %v267
        %v284 = vpack.c.b16 %v277, %v276
        %v285 = vpack.c.b16 %v279, %v278
        %v286 = vpack.c.b16 %v281, %v280
        %v287 = vpack.c.b16 %v283, %v282
        %vm292 = vcmask 523264
        %v294 = vsel %vm292, %v259, 0
        %296 = vmatprep.subr.bf16.mxu0 0
        %297 = vmatpush1.bf16.msra.mxu0 %v284
        %298 = vmatprep.subr.bf16.mxu0 0
        %299 = vmatpush1.bf16.msra.mxu0 %v285
        %300 = vmatprep.subr.bf16.mxu0 0
        %301 = vmatpush1.bf16.msra.mxu0 %v286
        %302 = vmatprep.subr.bf16.mxu0 0
        %303 = vmatpush1.bf16.msra.mxu0 %v287
        %304 = vmatprep.subr.bf16.mxu0 0
        %305 = vmatpush1.bf16.msra.mxu0 0
        %306 = vmatprep.subr.bf16.mxu0 0
        %307 = vmatpush1.bf16.msra.mxu0 0
        %308 = vmatprep.subr.bf16.mxu0 0
        %309 = vmatpush1.bf16.msra.mxu0 0
        %310 = vmatprep.subr.bf16.mxu0 0
        %311 = vmatpush1.bf16.msra.mxu0 0
        %312 = vmatprep.subr.bf16.mxu0 0
        %313 = vmatpush1.bf16.msra.mxu0 0
        %314 = vmatprep.subr.bf16.mxu0 0
        %315 = vmatpush1.bf16.msra.mxu0 0
        %316 = vmatprep.subr.bf16.mxu0 0
        %317 = vmatpush1.bf16.msra.mxu0 0
        %318 = vmatprep.subr.bf16.mxu0 0
        %319 = vmatpush1.bf16.msra.mxu0 0
        %320 = vmatprep.subr.bf16.mxu0 0
        %321 = vmatpush1.bf16.msra.mxu0 0
        %322 = vmatprep.subr.bf16.mxu0 0
        %323 = vmatpush1.bf16.msra.mxu0 0
        %324 = vmatprep.subr.bf16.mxu0 0
        %325 = vmatpush1.bf16.msra.mxu0 0
        %326 = vmatprep.subr.bf16.mxu0 0
        %327 = vmatpush1.bf16.msra.mxu0 0
        %328 = vmatprep.mubr.bf16.mxu0 0
        %329 = vmatmul.mubr.bf16.gmra.mrb[0].mxu0 %v294
        %v330 = vpop.f32.mrb[0].mxu0
        %v331 = vadd.f32 0.0, %v330
        %v332 = vpop.f32.mrb[0].mxu0
        %v333 = vpop.f32.mrb[0].mxu0
        %v334 = vpop.f32.mrb[0].mxu0
        %335 = vdwg.mxu0
        %v336 = vpack.c.bf16 %v331, %v331
        %v337 = vld [vmem:[%s2] sm:$0xff]
        %v338 = vld [vmem:[%s2 + $0x8] sm:$0xff]
        %v339 = vld [vmem:[%s2 + $0x10] sm:$0xff]
        %v340 = vld [vmem:[%s2 + $0x18] sm:$0xff]
        %v345 = vunpack.c.l.b16 %v337
        %v346 = vunpack.c.h.b16 %v337
        %v347 = vunpack.c.l.b16 %v338
        %v348 = vunpack.c.h.b16 %v338
        %v349 = vunpack.c.l.b16 %v339
        %v350 = vunpack.c.h.b16 %v339
        %v351 = vunpack.c.l.b16 %v340
        %v352 = vunpack.c.h.b16 %v340
        %v353 = vpack.c.b16 %v347, %v345
        %v354 = vpack.c.b16 %v348, %v346
        %v355 = vpack.c.b16 %v351, %v349
        %v356 = vpack.c.b16 %v352, %v350
        %vm361 = vcmask 261120
        %v363 = vsel %vm361, %v336, 0
        %365 = vmatprep.subr.bf16.mxu0 %v354
        %366 = vmatpush1.bf16.msra.mxu0 %v353
        %367 = vmatprep.subr.bf16.mxu0 %v356
        %368 = vmatpush1.bf16.msra.mxu0 %v355
        %369 = vmatprep.subr.bf16.mxu0 0
        %370 = vmatpush1.bf16.msra.mxu0 0
        %371 = vmatprep.subr.bf16.mxu0 0
        %372 = vmatpush1.bf16.msra.mxu0 0
        %373 = vmatprep.subr.bf16.mxu0 0
        %374 = vmatpush1.bf16.msra.mxu0 0
        %375 = vmatprep.subr.bf16.mxu0 0
        %376 = vmatpush1.bf16.msra.mxu0 0
        %377 = vmatprep.subr.bf16.mxu0 0
        %378 = vmatpush1.bf16.msra.mxu0 0
        %379 = vmatprep.subr.bf16.mxu0 0
        %380 = vmatpush1.bf16.msra.mxu0 0
        %381 = vmatprep.subr.bf16.mxu0 0
        %382 = vmatpush1.bf16.msra.mxu0 0
        %383 = vmatprep.subr.bf16.mxu0 0
        %384 = vmatpush1.bf16.msra.mxu0 0
        %385 = vmatprep.subr.bf16.mxu0 0
        %386 = vmatpush1.bf16.msra.mxu0 0
        %387 = vmatprep.subr.bf16.mxu0 0
        %388 = vmatpush1.bf16.msra.mxu0 0
        %389 = vmatprep.subr.bf16.mxu0 0
        %390 = vmatpush1.bf16.msra.mxu0 0
        %391 = vmatprep.subr.bf16.mxu0 0
        %392 = vmatpush1.bf16.msra.mxu0 0
        %393 = vmatprep.subr.bf16.mxu0 0
        %394 = vmatpush1.bf16.msra.mxu0 0
        %395 = vmatprep.subr.bf16.mxu0 0
        %396 = vmatpush1.bf16.msra.mxu0 0
        %397 = vmatprep.mubr.bf16.mxu0 0
        %398 = vmatmul.mubr.bf16.gmra.mrb[0].mxu0 %v363
        %v399 = vpop.f32.mrb[0].mxu0
        %v400 = vadd.f32 0.0, %v399
        %v401 = vpop.f32.mrb[0].mxu0
        %v402 = vadd.f32 0.0, %v401
        %v403 = vpop.f32.mrb[0].mxu0
        %v404 = vpop.f32.mrb[0].mxu0
        %405 = vdwg.mxu0
        %v406 = vmax.f32 %v400, 0.0
        %v407 = vmax.f32 %v402, 0.0
        %v408 = vpack.c.bf16 %v406, %v406
        %v409 = vpack.c.bf16 %v407, %v407
        %v410 = vld [vmem:[#allocation2] sm:$0xff]
        %v411 = vld [vmem:[#allocation2 + $0x8] sm:$0xff]
        %v412 = vld [vmem:[#allocation2 + $0x10] sm:$0xff]
        %v413 = vld [vmem:[#allocation2 + $0x18] sm:$0xff]
        %v414 = vld [vmem:[#allocation2 + $0x20] sm:$0xff]
        %v415 = vld [vmem:[#allocation2 + $0x28] sm:$0xff]
        %v416 = vld [vmem:[#allocation2 + $0x30] sm:$0xff]
        %v417 = vld [vmem:[#allocation2 + $0x38] sm:$0xff]
        %v418 = vld [vmem:[#allocation2 + $0x40] sm:$0xff]
        %v419 = vld [vmem:[#allocation2 + $0x48] sm:$0xff]
        %v420 = vld [vmem:[#allocation2 + $0x50] sm:$0xff]
        %v421 = vld [vmem:[#allocation2 + $0x58] sm:$0xff]
        %v422 = vld [vmem:[#allocation2 + $0x60] sm:$0xff]
        %v423 = vld [vmem:[#allocation2 + $0x68] sm:$0xff]
        %v424 = vld [vmem:[#allocation2 + $0x70] sm:$0xff]
        %v425 = vld [vmem:[#allocation2 + $0x78] sm:$0xff]
        %v426 = vld [vmem:[#allocation2 + $0x80] sm:$0xff]
        %v427 = vld [vmem:[#allocation2 + $0x88] sm:$0xff]
        %v428 = vld [vmem:[#allocation2 + $0x90] sm:$0xff]
        %v429 = vld [vmem:[#allocation2 + $0x98] sm:$0xff]
        %v430 = vld [vmem:[#allocation2 + $0xa0] sm:$0xff]
        %v431 = vld [vmem:[#allocation2 + $0xa8] sm:$0xff]
        %v432 = vld [vmem:[#allocation2 + $0xb0] sm:$0xff]
        %v433 = vld [vmem:[#allocation2 + $0xb8] sm:$0xff]
        %v434 = vld [vmem:[#allocation2 + $0xc0] sm:$0xff]
        %v435 = vld [vmem:[#allocation2 + $0xc8] sm:$0xff]
        %v436 = vld [vmem:[#allocation2 + $0xd0] sm:$0xff]
        %v437 = vld [vmem:[#allocation2 + $0xd8] sm:$0xff]
        %v438 = vld [vmem:[#allocation2 + $0xe0] sm:$0xff]
        %v439 = vld [vmem:[#allocation2 + $0xe8] sm:$0xff]
        %v440 = vld [vmem:[#allocation2 + $0xf0] sm:$0xff]
        %v441 = vld [vmem:[#allocation2 + $0xf8] sm:$0xff]
        %v474 = vunpack.c.l.b16 %v410
        %v475 = vunpack.c.h.b16 %v410
        %v476 = vunpack.c.l.b16 %v411
        %v477 = vunpack.c.h.b16 %v411
        %v478 = vunpack.c.l.b16 %v412
        %v479 = vunpack.c.h.b16 %v412
        %v480 = vunpack.c.l.b16 %v413
        %v481 = vunpack.c.h.b16 %v413
        %v482 = vunpack.c.l.b16 %v414
        %v483 = vunpack.c.h.b16 %v414
        %v484 = vunpack.c.l.b16 %v415
        %v485 = vunpack.c.h.b16 %v415
        %v486 = vunpack.c.l.b16 %v416
        %v487 = vunpack.c.h.b16 %v416
        %v488 = vunpack.c.l.b16 %v417
        %v489 = vunpack.c.h.b16 %v417
        %v490 = vunpack.c.l.b16 %v418
        %v491 = vunpack.c.h.b16 %v418
        %v492 = vunpack.c.l.b16 %v419
        %v493 = vunpack.c.h.b16 %v419
        %v494 = vunpack.c.l.b16 %v420
        %v495 = vunpack.c.h.b16 %v420
        %v496 = vunpack.c.l.b16 %v421
        %v497 = vunpack.c.h.b16 %v421
        %v498 = vunpack.c.l.b16 %v422
        %v499 = vunpack.c.h.b16 %v422
        %v500 = vunpack.c.l.b16 %v423
        %v501 = vunpack.c.h.b16 %v423
        %v502 = vunpack.c.l.b16 %v424
        %v503 = vunpack.c.h.b16 %v424
        %v504 = vunpack.c.l.b16 %v425
        %v505 = vunpack.c.h.b16 %v425
        %v506 = vunpack.c.l.b16 %v426
        %v507 = vunpack.c.h.b16 %v426
        %v508 = vunpack.c.l.b16 %v427
        %v509 = vunpack.c.h.b16 %v427
        %v510 = vunpack.c.l.b16 %v428
        %v511 = vunpack.c.h.b16 %v428
        %v512 = vunpack.c.l.b16 %v429
        %v513 = vunpack.c.h.b16 %v429
        %v514 = vunpack.c.l.b16 %v430
        %v515 = vunpack.c.h.b16 %v430
        %v516 = vunpack.c.l.b16 %v431
        %v517 = vunpack.c.h.b16 %v431
        %v518 = vunpack.c.l.b16 %v432
        %v519 = vunpack.c.h.b16 %v432
        %v520 = vunpack.c.l.b16 %v433
        %v521 = vunpack.c.h.b16 %v433
        %v522 = vunpack.c.l.b16 %v434
        %v523 = vunpack.c.h.b16 %v434
        %v524 = vunpack.c.l.b16 %v435
        %v525 = vunpack.c.h.b16 %v435
        %v526 = vunpack.c.l.b16 %v436
        %v527 = vunpack.c.h.b16 %v436
        %v528 = vunpack.c.l.b16 %v437
        %v529 = vunpack.c.h.b16 %v437
        %v530 = vunpack.c.l.b16 %v438
        %v531 = vunpack.c.h.b16 %v438
        %v532 = vunpack.c.l.b16 %v439
        %v533 = vunpack.c.h.b16 %v439
        %v534 = vunpack.c.l.b16 %v440
        %v535 = vunpack.c.h.b16 %v440
        %v536 = vunpack.c.l.b16 %v441
        %v537 = vunpack.c.h.b16 %v441
        %v538 = vpack.c.b16 %v476, %v474
        %v539 = vpack.c.b16 %v477, %v475
        %v540 = vpack.c.b16 %v480, %v478
        %v541 = vpack.c.b16 %v481, %v479
        %v542 = vpack.c.b16 %v484, %v482
        %v543 = vpack.c.b16 %v485, %v483
        %v544 = vpack.c.b16 %v488, %v486
        %v545 = vpack.c.b16 %v489, %v487
        %v546 = vpack.c.b16 %v492, %v490
        %v547 = vpack.c.b16 %v493, %v491
        %v548 = vpack.c.b16 %v496, %v494
        %v549 = vpack.c.b16 %v497, %v495
        %v550 = vpack.c.b16 %v500, %v498
        %v551 = vpack.c.b16 %v501, %v499
        %v552 = vpack.c.b16 %v504, %v502
        %v553 = vpack.c.b16 %v505, %v503
        %v554 = vpack.c.b16 %v508, %v506
        %v555 = vpack.c.b16 %v509, %v507
        %v556 = vpack.c.b16 %v512, %v510
        %v557 = vpack.c.b16 %v513, %v511
        %v558 = vpack.c.b16 %v516, %v514
        %v559 = vpack.c.b16 %v517, %v515
        %v560 = vpack.c.b16 %v520, %v518
        %v561 = vpack.c.b16 %v521, %v519
        %v562 = vpack.c.b16 %v524, %v522
        %v563 = vpack.c.b16 %v525, %v523
        %v564 = vpack.c.b16 %v528, %v526
        %v565 = vpack.c.b16 %v529, %v527
        %v566 = vpack.c.b16 %v532, %v530
        %v567 = vpack.c.b16 %v533, %v531
        %v568 = vpack.c.b16 %v536, %v534
        %v569 = vpack.c.b16 %v537, %v535
        %602 = vmatprep.subr.bf16.mxu0 %v539
        %603 = vmatpush1.bf16.msra.mxu0 %v538
        %604 = vmatprep.subr.bf16.mxu0 %v541
        %605 = vmatpush1.bf16.msra.mxu0 %v540
        %606 = vmatprep.subr.bf16.mxu0 %v543
        %607 = vmatpush1.bf16.msra.mxu0 %v542
        %608 = vmatprep.subr.bf16.mxu0 %v545
        %609 = vmatpush1.bf16.msra.mxu0 %v544
        %610 = vmatprep.subr.bf16.mxu0 %v547
        %611 = vmatpush1.bf16.msra.mxu0 %v546
        %612 = vmatprep.subr.bf16.mxu0 %v549
        %613 = vmatpush1.bf16.msra.mxu0 %v548
        %614 = vmatprep.subr.bf16.mxu0 %v551
        %615 = vmatpush1.bf16.msra.mxu0 %v550
        %616 = vmatprep.subr.bf16.mxu0 %v553
        %617 = vmatpush1.bf16.msra.mxu0 %v552
        %618 = vmatprep.subr.bf16.mxu0 %v555
        %619 = vmatpush1.bf16.msra.mxu0 %v554
        %620 = vmatprep.subr.bf16.mxu0 %v557
        %621 = vmatpush1.bf16.msra.mxu0 %v556
        %622 = vmatprep.subr.bf16.mxu0 %v559
        %623 = vmatpush1.bf16.msra.mxu0 %v558
        %624 = vmatprep.subr.bf16.mxu0 %v561
        %625 = vmatpush1.bf16.msra.mxu0 %v560
        %626 = vmatprep.subr.bf16.mxu0 %v563
        %627 = vmatpush1.bf16.msra.mxu0 %v562
        %628 = vmatprep.subr.bf16.mxu0 %v565
        %629 = vmatpush1.bf16.msra.mxu0 %v564
        %630 = vmatprep.subr.bf16.mxu0 %v567
        %631 = vmatpush1.bf16.msra.mxu0 %v566
        %632 = vmatprep.subr.bf16.mxu0 %v569
        %633 = vmatpush1.bf16.msra.mxu0 %v568
        %634 = vmatprep.mubr.bf16.mxu0 %v409
        %635 = vmatmul.mubr.bf16.gmra.mrb[0].mxu0 %v408
        %v636 = vpop.f32.mrb[0].mxu0
        %v637 = vadd.f32 0.0, %v636
        %v638 = vpop.f32.mrb[0].mxu0
        %v639 = vadd.f32 0.0, %v638
        %v640 = vpop.f32.mrb[0].mxu0
        %v641 = vpop.f32.mrb[0].mxu0
        %642 = vdwg.mxu0
        %v643 = vmax.f32 %v637, 0.0
        %v644 = vmax.f32 %v639, 0.0
        %v645 = vpack.c.bf16 %v643, %v643
        %v646 = vpack.c.bf16 %v644, %v644
        %v647 = vld [vmem:[%s4] sm:$0xf]
        %v648 = vld [vmem:[%s4 + $0x4] sm:$0xf]
        %v649 = vld [vmem:[%s4 + $0x8] sm:$0xf]
        %v650 = vld [vmem:[%s4 + $0xc] sm:$0xf]
        %v651 = vld [vmem:[%s4 + $0x10] sm:$0xf]
        %v652 = vld [vmem:[%s4 + $0x14] sm:$0xf]
        %v653 = vld [vmem:[%s4 + $0x18] sm:$0xf]
        %v654 = vld [vmem:[%s4 + $0x1c] sm:$0xf]
        %v655 = vld [vmem:[%s4 + $0x20] sm:$0xf]
        %v656 = vld [vmem:[%s4 + $0x24] sm:$0xf]
        %v657 = vld [vmem:[%s4 + $0x28] sm:$0xf]
        %v658 = vld [vmem:[%s4 + $0x2c] sm:$0xf]
        %v659 = vld [vmem:[%s4 + $0x30] sm:$0xf]
        %v660 = vld [vmem:[%s4 + $0x34] sm:$0xf]
        %v661 = vld [vmem:[%s4 + $0x38] sm:$0xf]
        %v662 = vld [vmem:[%s4 + $0x3c] sm:$0xf]
        %v663 = vld [vmem:[%s4 + $0x40] sm:$0xf]
        %v664 = vld [vmem:[%s4 + $0x44] sm:$0xf]
        %v665 = vld [vmem:[%s4 + $0x48] sm:$0xf]
        %v666 = vld [vmem:[%s4 + $0x4c] sm:$0xf]
        %v667 = vld [vmem:[%s4 + $0x50] sm:$0xf]
        %v668 = vld [vmem:[%s4 + $0x54] sm:$0xf]
        %v669 = vld [vmem:[%s4 + $0x58] sm:$0xf]
        %v670 = vld [vmem:[%s4 + $0x5c] sm:$0xf]
        %v671 = vld [vmem:[%s4 + $0x60] sm:$0xf]
        %v672 = vld [vmem:[%s4 + $0x64] sm:$0xf]
        %v673 = vld [vmem:[%s4 + $0x68] sm:$0xf]
        %v674 = vld [vmem:[%s4 + $0x6c] sm:$0xf]
        %v675 = vld [vmem:[%s4 + $0x70] sm:$0xf]
        %v676 = vld [vmem:[%s4 + $0x74] sm:$0xf]
        %v677 = vld [vmem:[%s4 + $0x78] sm:$0xf]
        %v678 = vld [vmem:[%s4 + $0x7c] sm:$0xf]
        %v711 = vunpack.c.l.b16 %v647
        %v712 = vunpack.c.l.b16 %v648
        %v713 = vunpack.c.l.b16 %v649
        %v714 = vunpack.c.l.b16 %v650
        %v715 = vunpack.c.l.b16 %v651
        %v716 = vunpack.c.l.b16 %v652
        %v717 = vunpack.c.l.b16 %v653
        %v718 = vunpack.c.l.b16 %v654
        %v719 = vunpack.c.l.b16 %v655
        %v720 = vunpack.c.l.b16 %v656
        %v721 = vunpack.c.l.b16 %v657
        %v722 = vunpack.c.l.b16 %v658
        %v723 = vunpack.c.l.b16 %v659
        %v724 = vunpack.c.l.b16 %v660
        %v725 = vunpack.c.l.b16 %v661
        %v726 = vunpack.c.l.b16 %v662
        %v727 = vunpack.c.l.b16 %v663
        %v728 = vunpack.c.l.b16 %v664
        %v729 = vunpack.c.l.b16 %v665
        %v730 = vunpack.c.l.b16 %v666
        %v731 = vunpack.c.l.b16 %v667
        %v732 = vunpack.c.l.b16 %v668
        %v733 = vunpack.c.l.b16 %v669
        %v734 = vunpack.c.l.b16 %v670
        %v735 = vunpack.c.l.b16 %v671
        %v736 = vunpack.c.l.b16 %v672
        %v737 = vunpack.c.l.b16 %v673
        %v738 = vunpack.c.l.b16 %v674
        %v739 = vunpack.c.l.b16 %v675
        %v740 = vunpack.c.l.b16 %v676
        %v741 = vunpack.c.l.b16 %v677
        %v742 = vunpack.c.l.b16 %v678
        %v743 = vpack.c.b16 %v712, %v711
        %v744 = vpack.c.b16 %v714, %v713
        %v745 = vpack.c.b16 %v716, %v715
        %v746 = vpack.c.b16 %v718, %v717
        %v747 = vpack.c.b16 %v720, %v719
        %v748 = vpack.c.b16 %v722, %v721
        %v749 = vpack.c.b16 %v724, %v723
        %v750 = vpack.c.b16 %v726, %v725
        %v751 = vpack.c.b16 %v728, %v727
        %v752 = vpack.c.b16 %v730, %v729
        %v753 = vpack.c.b16 %v732, %v731
        %v754 = vpack.c.b16 %v734, %v733
        %v755 = vpack.c.b16 %v736, %v735
        %v756 = vpack.c.b16 %v738, %v737
        %v757 = vpack.c.b16 %v740, %v739
        %v758 = vpack.c.b16 %v742, %v741
        %775 = vmatprep.subr.bf16.mxu0 0
        %776 = vmatpush1.bf16.msra.mxu0 %v743
        %777 = vmatprep.subr.bf16.mxu0 0
        %778 = vmatpush1.bf16.msra.mxu0 %v744
        %779 = vmatprep.subr.bf16.mxu0 0
        %780 = vmatpush1.bf16.msra.mxu0 %v745
        %781 = vmatprep.subr.bf16.mxu0 0
        %782 = vmatpush1.bf16.msra.mxu0 %v746
        %783 = vmatprep.subr.bf16.mxu0 0
        %784 = vmatpush1.bf16.msra.mxu0 %v747
        %785 = vmatprep.subr.bf16.mxu0 0
        %786 = vmatpush1.bf16.msra.mxu0 %v748
        %787 = vmatprep.subr.bf16.mxu0 0
        %788 = vmatpush1.bf16.msra.mxu0 %v749
        %789 = vmatprep.subr.bf16.mxu0 0
        %790 = vmatpush1.bf16.msra.mxu0 %v750
        %791 = vmatprep.subr.bf16.mxu0 0
        %792 = vmatpush1.bf16.msra.mxu0 %v751
        %793 = vmatprep.subr.bf16.mxu0 0
        %794 = vmatpush1.bf16.msra.mxu0 %v752
        %795 = vmatprep.subr.bf16.mxu0 0
        %796 = vmatpush1.bf16.msra.mxu0 %v753
        %797 = vmatprep.subr.bf16.mxu0 0
        %798 = vmatpush1.bf16.msra.mxu0 %v754
        %799 = vmatprep.subr.bf16.mxu0 0
        %800 = vmatpush1.bf16.msra.mxu0 %v755
        %801 = vmatprep.subr.bf16.mxu0 0
        %802 = vmatpush1.bf16.msra.mxu0 %v756
        %803 = vmatprep.subr.bf16.mxu0 0
        %804 = vmatpush1.bf16.msra.mxu0 %v757
        %805 = vmatprep.subr.bf16.mxu0 0
        %806 = vmatpush1.bf16.msra.mxu0 %v758
        %807 = vmatprep.mubr.bf16.mxu0 %v646
        %808 = vmatmul.mubr.bf16.gmra.mrb[0].mxu0 %v645
        %v809 = vpop.f32.mrb[0].mxu0
        %v810 = vadd.f32 0.0, %v809
        %v811 = vpop.f32.mrb[0].mxu0
        %v812 = vpop.f32.mrb[0].mxu0
        %v813 = vpop.f32.mrb[0].mxu0
        %814 = vdwg.mxu0
        %v815 = vpack.c.bf16 %v810, %v810
        %v816 = vld [vmem:[%s5] sm:$0xf]
        %v817 = vld [vmem:[%s5 + $0x4] sm:$0xf]
        %v818 = vld [vmem:[%s5 + $0x8] sm:$0xf]
        %v819 = vld [vmem:[%s5 + $0xc] sm:$0xf]
        %v824 = vunpack.c.l.b16 %v816
        %v825 = vunpack.c.l.b16 %v817
        %v826 = vunpack.c.l.b16 %v818
        %v827 = vunpack.c.l.b16 %v819
        %v828 = vpack.c.b16 %v825, %v824
        %v829 = vpack.c.b16 %v827, %v826
        %v833 = vsel %vm361, %v815, 0
        %835 = vmatprep.subr.bf16.mxu0 0
        %836 = vmatpush1.bf16.msra.mxu0 %v828
        %837 = vmatprep.subr.bf16.mxu0 0
        %838 = vmatpush1.bf16.msra.mxu0 %v829
        %839 = vmatprep.subr.bf16.mxu0 0
        %840 = vmatpush1.bf16.msra.mxu0 0
        %841 = vmatprep.subr.bf16.mxu0 0
        %842 = vmatpush1.bf16.msra.mxu0 0
        %843 = vmatprep.subr.bf16.mxu0 0
        %844 = vmatpush1.bf16.msra.mxu0 0
        %845 = vmatprep.subr.bf16.mxu0 0
        %846 = vmatpush1.bf16.msra.mxu0 0
        %847 = vmatprep.subr.bf16.mxu0 0
        %848 = vmatpush1.bf16.msra.mxu0 0
        %849 = vmatprep.subr.bf16.mxu0 0
        %850 = vmatpush1.bf16.msra.mxu0 0
        %851 = vmatprep.subr.bf16.mxu0 0
        %852 = vmatpush1.bf16.msra.mxu0 0
        %853 = vmatprep.subr.bf16.mxu0 0
        %854 = vmatpush1.bf16.msra.mxu0 0
        %855 = vmatprep.subr.bf16.mxu0 0
        %856 = vmatpush1.bf16.msra.mxu0 0
        %857 = vmatprep.subr.bf16.mxu0 0
        %858 = vmatpush1.bf16.msra.mxu0 0
        %859 = vmatprep.subr.bf16.mxu0 0
        %860 = vmatpush1.bf16.msra.mxu0 0
        %861 = vmatprep.subr.bf16.mxu0 0
        %862 = vmatpush1.bf16.msra.mxu0 0
        %863 = vmatprep.subr.bf16.mxu0 0
        %864 = vmatpush1.bf16.msra.mxu0 0
        %865 = vmatprep.subr.bf16.mxu0 0
        %866 = vmatpush1.bf16.msra.mxu0 0
        %867 = vmatprep.mubr.bf16.mxu0 0
        %868 = vmatmul.mubr.bf16.gmra.mrb[0].mxu0 %v833
        %v869 = vpop.f32.mrb[0].mxu0
        %v870 = vadd.f32 0.0, %v869
        %v871 = vpop.f32.mrb[0].mxu0
        %v872 = vpop.f32.mrb[0].mxu0
        %v873 = vpop.f32.mrb[0].mxu0
        %874 = vdwg.mxu0
        %vm875 = vcmask 516096
        %876 = vst.msk [vmem:[%s254] sm:$0x1] %vm875, %v870
        %s877 = sand.u32 %s160, 1
        %s878 = scalar_lea.sflag [#allocation4], %s877
        %s879 = sand.u32 %s160, 1
        %s880 = scalar_lea.vmem [#allocation5], %s879
        // Predicated region
        $region49: #{tpu_custom_call.1} parent=43 // pred_check
          %p881 = pneg %p170
        $region50: #{tpu_custom_call.1} parent=43 // pred_check_branch
          %883 = sbr.rel (%p881) target = $region52
        $region51: #{tpu_custom_call.1} parent=43 // pred_region
          %s885 = ssub.s32 16, 16
          %886 = vsyncadd %s878, %s885
          %s887 = smul.addr %s21, 16
          %s888 = scalar_lea.hbm %s6, %s887
          %s890 = sshll.u32 %s880, 4
          %s891 = int_to_ptr.vmem [resolvable:$true] %s890
          %893 = dma.vmem_to_hbm [thread:$0]  %s891, 16, %s888, %s878
        $region52: #{tpu_custom_call.1} parent=43 // pred_fallthru
          _
      $region44: #{tpu_custom_call.1} parent=5 // pred_fallthru
        _
      %p894 = scmp.le.s32.totalorder 2, %s16
      // Predicated region
      $region53: #{tpu_custom_call.1} parent=5 // pred_check
        %p895 = pneg %p894
      $region54: #{tpu_custom_call.1} parent=5 // pred_check_branch
        %897 = sbr.rel (%p895) target = $region56
      $region55: #{tpu_custom_call.1} parent=5 // pred_region
        %s898 = ssub.s32 %s16, 2
        // Predicated region
        $region57: #{tpu_custom_call.1} parent=55 // pred_check
          %p899 = pneg %p176
        $region58: #{tpu_custom_call.1} parent=55 // pred_check_branch
          %901 = sbr.rel (%p899) target = $region60
        $region59: #{tpu_custom_call.1} parent=55 // pred_region
          %s902 = sand.u32 %s161, 1
          %s903 = scalar_lea.sflag [#allocation4], %s902
          %s904 = sand.u32 %s161, 1
          %s905 = scalar_lea.vmem [#allocation5], %s904
          %906 = dma.done %s903, 16
        $region60: #{tpu_custom_call.1} parent=55 // pred_fallthru
          _
      $region56: #{tpu_custom_call.1} parent=5 // pred_fallthru
        _
    $region6: #{tpu_custom_call.1} parent=1 // loop_footer
      %s20 = sadd.s32 1, %s16
    $region7: #{tpu_custom_call.1} parent=1 // loop_footer_branch
      %15 = sbr.rel target = $region3
    $region8: #{tpu_custom_call.1} parent=1 // loop_exit
      _
    %907 = vsyncpa [#allocation3], 1
    %s908 = scalar_lea.sflag [#allocation3], 1
    %909 = vsyncpa %s908, 1
    %910 = vsyncpa [#allocation4], 1
    %s911 = scalar_lea.sflag [#allocation4], 1
    %912 = vsyncpa %s911, 1

</llo_original>
